<compile_context>
chip_gen: v7x
topology: tpu7x:2x2x1
jax: 0.10.0
libtpu: 0.0.40
codegen_flags: <defaults>
</compile_context>

<pallas_src>
import functools

import jax
import jax.numpy as jnp
from jax.experimental import pallas as pl
from jax.experimental.pallas import tpu as pltpu


def _dice_partial_kernel(x_ref, t_ref, out_ref, *, normalization: str):
    """One (batch, split, row-tile) step: accumulate packed per-channel partials.

    out_ref is (3, C, 8, 128): [0]=sum(x*t), [1]=sum(x*x), [2]=sum(t*t).
    Only whole-vreg row groups are reduced here; sublane/lane folds happen in
    the tiny JAX epilogue.
    """
    i = pl.program_id(2)                       # row-tile index (reduction axis)

    x = x_ref[...]                             # (C, tile_rows, 128)
    if x.dtype != jnp.float32:
        x = x.astype(jnp.float32)
    t = t_ref[...]
    if t.dtype != jnp.float32:
        t = t.astype(jnp.float32)

    # self.normalization(input)
    if normalization == "sigmoid":
        # sigmoid(x) == 0.5*(tanh(x/2)+1): a single EUP op/elem (no exp+div).
        x = 0.5 * (jnp.tanh(0.5 * x) + 1.0)
    elif normalization == "softmax":
        # torch dim=1 (channels) == axis 0 here; the full channel extent is
        # resident in every block, so the per-tile softmax is exact.
        x = jax.nn.softmax(x, axis=0)
    # 'none' -> identity

    # (C, tile_rows, 128) -> (C, g, 8, 128): reduce over whole vregs only
    # (pure VPU adds; no in-vreg sublane rotate chain in the hot loop).
    C, tr, L = x_ref.shape
    g = tr // 8
    xg = x.reshape(C, g, 8, L)
    tg = t.reshape(C, g, 8, L)
    inter = jnp.sum(xg * tg, axis=1)           # (C, 8, 128)
    xsq = jnp.sum(xg * xg, axis=1)
    tsq = jnp.sum(tg * tg, axis=1)

    @pl.when(i == 0)
    def _init():
        out_ref[0, ...] = inter
        out_ref[1, ...] = xsq
        out_ref[2, ...] = tsq

    @pl.when(i != 0)
    def _accum():
        out_ref[0, ...] += inter
        out_ref[1, ...] += xsq
        out_ref[2, ...] += tsq


def dice_loss(x, target, weight=None, *, normalization="sigmoid",
              epsilon=1e-6, block_bytes=8 * 1024 * 1024):
    """Dice loss for NCHW inputs.

    x, target: (B, C, H, W); weight: optional (C,).  Returns a scalar.
    `block_bytes` is the combined per-step HBM read (both inputs, native
    dtypes); default ~8 MiB double-buffers to ~16 MiB VMEM, which fits all of
    v5e/v6e/v7x with the explicit vmem_limit set below.  Streaming a binary
    `target` as bf16/int8 is exact for 0/1 and directly cuts HBM traffic.
    """
    assert normalization in ("sigmoid", "softmax", "none")
    B, C, H, W = x.shape
    assert target.shape == x.shape
    n_hw = H * W

    # Free reshapes only (no HBM transpose): NCHW -> (B, C, HW).
    xf = x.reshape(B, C, n_hw)
    tf = target.reshape(B, C, n_hw)

    isx = jnp.dtype(x.dtype).itemsize
    ist = jnp.dtype(target.dtype).itemsize
    # Sublane granule of the narrowest streamed dtype satisfies both inputs.
    granule = {4: 8, 2: 16, 1: 32}.get(min(isx, ist), 8)

    rows = pl.cdiv(n_hw, 128)
    bytes_per_row = C * 128 * (isx + ist)                 # both inputs, native dtypes
    tr = max(granule, (block_bytes // bytes_per_row // granule) * granule)
    rows_g = ((rows + granule - 1) // granule) * granule
    tile_rows = min(tr, rows_g)
    rows_pad = ((rows + tile_rows - 1) // tile_rows) * tile_rows
    total_tiles = rows_pad // tile_rows

    # v7x: 2-way spatial 'parallel' split so both TensorCores engage even at
    # B == 1 / odd B.  Neutral on single-TC v5e/v6e.
    if total_tiles >= 2 and total_tiles % 2 == 0:
        n_split = 2
    elif total_tiles >= 9:            # odd but large: one extra pad tile is cheap
        total_tiles += 1
        rows_pad = total_tiles * tile_rows
        n_split = 2
    else:
        n_split = 1
    tiles_per_split = total_tiles // n_split

    n_pad_elems = rows_pad * 128 - n_hw
    if n_pad_elems:
        xf = jnp.pad(xf, ((0, 0), (0, 0), (0, n_pad_elems)))
        tf = jnp.pad(tf, ((0, 0), (0, 0), (0, n_pad_elems)))
    xf = xf.reshape(B, C, rows_pad, 128)
    tf = tf.reshape(B, C, rows_pad, 128)

    # VMEM budget: double-buffered inputs + accumulator output.  Guard v7x's
    # 64 MiB physical VMEM (large C clamps tile_rows to the granule and can
    # otherwise blow past it even when v5e/v6e would fit).
    in_block = C * tile_rows * 128 * (isx + ist)
    out_block = 3 * C * 8 * 128 * 4
    vmem_need = 2 * (in_block + out_block)
    if vmem_need > (44 << 20):
        raise ValueError(
            f"dice_loss tiling needs ~{vmem_need >> 20} MiB VMEM (C={C}, "
            f"tile_rows={tile_rows}); lower block_bytes to fit v7x's 64 MiB VMEM.")
    vmem_limit = min(max(int(vmem_need * 1.25) + (4 << 20), 32 << 20), 56 << 20)

    grid = (B, n_split, tiles_per_split)
    kernel = functools.partial(_dice_partial_kernel, normalization=normalization)

    in_spec = pl.BlockSpec(
        (None, C, tile_rows, 128),
        lambda b, s, i: (b, 0, s * tiles_per_split + i, 0))
    out_spec = pl.BlockSpec(
        (None, None, 3, C, 8, 128),
        lambda b, s, i: (b, s, 0, 0, 0, 0))

    parts = pl.pallas_call(
        kernel,
        out_shape=jax.ShapeDtypeStruct((B, n_split, 3, C, 8, 128), jnp.float32),
        grid_spec=pltpu.PrefetchScalarGridSpec(
            num_scalar_prefetch=0,
            grid=grid,
            in_specs=[in_spec, in_spec],
            out_specs=out_spec,
        ),
        compiler_params=pltpu.CompilerParams(
            dimension_semantics=("parallel", "parallel", "arbitrary"),
            vmem_limit_bytes=vmem_limit),
    )(xf, tf)

    # Tiny JAX epilogue: fold batch/split/sublane/lane, subtract the exact pad
    # leak, apply weight, clamp, dice, mean.
    sums = jnp.sum(parts, axis=(0, 1, 4, 5))              # (3, C)
    inter_c, xsq_c, tsq_c = sums[0], sums[1], sums[2]

    if n_pad_elems:
        # Padded x is exactly 0: after normalization it contributes a known
        # constant to sum(x^2) only (t is zero-padded, so x*t and t*t are 0).
        if normalization == "sigmoid":
            leak = 0.25                                   # sigmoid(0)^2
        elif normalization == "softmax":
            leak = 1.0 / (C * C)                          # softmax(0-vector)[c]^2
        else:
            leak = 0.0
        xsq_c = xsq_c - jnp.float32(B * n_pad_elems * leak)

    # TODO(synk): `dice()` is abstract in _AbstractDiceLoss; this is the
    # canonical per-channel Dice of the standard DiceLoss subclass
    # (batch-summed flatten convention, weight applied to the numerator).
    if weight is not None:
        inter_c = inter_c * weight.astype(jnp.float32)
    denom = jnp.maximum(xsq_c + tsq_c, epsilon)
    per_channel_dice = 2.0 * inter_c / denom
    return 1.0 - jnp.mean(per_channel_dice)


if __name__ == "__main__":
    B, C, H, W = 2, 4, 16, 16
    key = jax.random.PRNGKey(0)
    kx, kt = jax.random.split(key)

    x = jax.random.normal(kx, (B, C, H, W), dtype=jnp.float32)
    target = (jax.random.uniform(kt, (B, C, H, W)) > 0.5).astype(jnp.float32)
    # Binary mask -> bf16 is exact for 0/1 and halves the target's HBM traffic
    # (the kernel is memory bound, so fewer bytes ~= proportional speedup).
    target_bf16 = target.astype(jnp.bfloat16)

    def ref_loss(xv, tv, norm):
        if norm == "sigmoid":
            xn = jax.nn.sigmoid(xv)
        elif norm == "softmax":
            xn = jax.nn.softmax(xv, axis=1)
        else:
            xn = xv
        xr = xn.reshape(B, C, -1)
        tr = tv.reshape(B, C, -1)
        inter = jnp.sum(xr * tr, axis=(0, 2))
        denom = jnp.maximum(jnp.sum(xr * xr, axis=(0, 2))
                            + jnp.sum(tr * tr, axis=(0, 2)), 1e-6)
        return 1.0 - jnp.mean(2.0 * inter / denom)

    ok = True
    for norm in ("sigmoid", "softmax", "none"):
        loss = dice_loss(x, target_bf16, weight=None, normalization=norm)
        loss = jax.block_until_ready(loss)
        ref = float(ref_loss(x, target, norm))
        if abs(float(loss) - ref) > 5e-5:
            ok = False
            print(f"MISMATCH [{norm}]: kernel={float(loss)} ref={ref}")

    assert ok
    print("KERNEL_OK")
</pallas_src>

<mosaic_0001>
module attributes {stable_mosaic.version = 11 : i64} {
  func.func @_dice_partial_kernel(%arg0: i32, %arg1: i32, %arg2: i32, %arg3: memref<1x4x16x128xf32, #tpu.memory_space<vmem>>, %arg4: memref<1x4x16x128xbf16, #tpu.memory_space<vmem>>, %arg5: memref<1x1x3x4x8x128xf32, #tpu.memory_space<vmem>>) attributes {dimension_semantics = [#tpu.dimension_semantics<parallel>, #tpu.dimension_semantics<parallel>, #tpu.dimension_semantics<arbitrary>], iteration_bounds = array<i64: 2, 1, 1>, scalar_prefetch = 0 : i64, scratch_operands = 0 : i64, tpu.core_type = #tpu.core_type<tc>, window_params = [{transform_indices = @transform_0, window_bounds = array<i64: 1, 4, 16, 128>}, {transform_indices = @transform_1, window_bounds = array<i64: 1, 4, 16, 128>}, {transform_indices = @transform_2, window_bounds = array<i64: 1, 1, 3, 4, 8, 128>}]} {
    %c0 = arith.constant 0 : index
    %c0_0 = arith.constant 0 : index
    %c0_1 = arith.constant 0 : index
    %c0_2 = arith.constant 0 : index
    %0 = vector.load %arg3[%c0, %c0_0, %c0_1, %c0_2] : memref<1x4x16x128xf32, #tpu.memory_space<vmem>>, vector<1x4x16x128xf32>
    %1 = vector.shape_cast %0 : vector<1x4x16x128xf32> to vector<4x16x128xf32>
    %c0_3 = arith.constant 0 : index
    %c0_4 = arith.constant 0 : index
    %c0_5 = arith.constant 0 : index
    %c0_6 = arith.constant 0 : index
    %2 = vector.load %arg4[%c0_3, %c0_4, %c0_5, %c0_6] : memref<1x4x16x128xbf16, #tpu.memory_space<vmem>>, vector<1x4x16x128xbf16>
    %3 = vector.shape_cast %2 : vector<1x4x16x128xbf16> to vector<4x16x128xbf16>
    %4 = arith.extf %3 : vector<4x16x128xbf16> to vector<4x16x128xf32>
    %cst = arith.constant 5.000000e-01 : f32
    %5 = vector.broadcast %cst : f32 to vector<4x16x128xf32>
    %6 = arith.mulf %5, %1 : vector<4x16x128xf32>
    %7 = math.tanh %6 : vector<4x16x128xf32>
    %cst_7 = arith.constant 1.000000e+00 : f32
    %8 = vector.broadcast %cst_7 : f32 to vector<4x16x128xf32>
    %9 = arith.addf %7, %8 : vector<4x16x128xf32>
    %cst_8 = arith.constant 5.000000e-01 : f32
    %10 = vector.broadcast %cst_8 : f32 to vector<4x16x128xf32>
    %11 = arith.mulf %10, %9 : vector<4x16x128xf32>
    %12 = vector.shape_cast %11 : vector<4x16x128xf32> to vector<4x2x8x128xf32>
    %13 = vector.shape_cast %4 : vector<4x16x128xf32> to vector<4x2x8x128xf32>
    %14 = arith.mulf %12, %13 : vector<4x2x8x128xf32>
    %cst_9 = arith.constant dense<0.000000e+00> : vector<4x8x128xf32>
    %15 = vector.multi_reduction <add>, %14, %cst_9 [1] : vector<4x2x8x128xf32> to vector<4x8x128xf32>
    %16 = arith.mulf %12, %12 : vector<4x2x8x128xf32>
    %cst_10 = arith.constant dense<0.000000e+00> : vector<4x8x128xf32>
    %17 = vector.multi_reduction <add>, %16, %cst_10 [1] : vector<4x2x8x128xf32> to vector<4x8x128xf32>
    %18 = arith.mulf %13, %13 : vector<4x2x8x128xf32>
    %cst_11 = arith.constant dense<0.000000e+00> : vector<4x8x128xf32>
    %19 = vector.multi_reduction <add>, %18, %cst_11 [1] : vector<4x2x8x128xf32> to vector<4x8x128xf32>
    %c0_i32 = arith.constant 0 : i32
    %20 = arith.cmpi eq, %arg2, %c0_i32 : i32
    %21 = arith.extui %20 : i1 to i32
    %c0_i32_12 = arith.constant 0 : i32
    %22 = arith.cmpi ne, %21, %c0_i32_12 : i32
    scf.if %22 {
      %c0_15 = arith.constant 0 : index
      %c0_16 = arith.constant 0 : index
      %c0_17 = arith.constant 0 : index
      %c0_18 = arith.constant 0 : index
      %c0_19 = arith.constant 0 : index
      %c0_20 = arith.constant 0 : index
      %26 = vector.load %arg5[%c0_15, %c0_16, %c0_17, %c0_18, %c0_19, %c0_20] : memref<1x1x3x4x8x128xf32, #tpu.memory_space<vmem>>, vector<1x1x1x4x8x128xf32>
      %27 = vector.shape_cast %26 : vector<1x1x1x4x8x128xf32> to vector<4x8x128xf32>
      %28 = vector.shape_cast %15 : vector<4x8x128xf32> to vector<1x1x1x4x8x128xf32>
      tpu.vector_store %arg5[%c0_15, %c0_16, %c0_17, %c0_18, %c0_19, %c0_20], %28 {strides = array<i32>} : memref<1x1x3x4x8x128xf32, #tpu.memory_space<vmem>>, vector<1x1x1x4x8x128xf32>,
      %c0_21 = arith.constant 0 : index
      %c0_22 = arith.constant 0 : index
      %c1 = arith.constant 1 : index
      %c0_23 = arith.constant 0 : index
      %c0_24 = arith.constant 0 : index
      %c0_25 = arith.constant 0 : index
      %29 = vector.load %arg5[%c0_21, %c0_22, %c1, %c0_23, %c0_24, %c0_25] : memref<1x1x3x4x8x128xf32, #tpu.memory_space<vmem>>, vector<1x1x1x4x8x128xf32>
      %30 = vector.shape_cast %29 : vector<1x1x1x4x8x128xf32> to vector<4x8x128xf32>
      %31 = vector.shape_cast %17 : vector<4x8x128xf32> to vector<1x1x1x4x8x128xf32>
      tpu.vector_store %arg5[%c0_21, %c0_22, %c1, %c0_23, %c0_24, %c0_25], %31 {strides = array<i32>} : memref<1x1x3x4x8x128xf32, #tpu.memory_space<vmem>>, vector<1x1x1x4x8x128xf32>,
      %c0_26 = arith.constant 0 : index
      %c0_27 = arith.constant 0 : index
      %c2 = arith.constant 2 : index
      %c0_28 = arith.constant 0 : index
      %c0_29 = arith.constant 0 : index
      %c0_30 = arith.constant 0 : index
      %32 = vector.load %arg5[%c0_26, %c0_27, %c2, %c0_28, %c0_29, %c0_30] : memref<1x1x3x4x8x128xf32, #tpu.memory_space<vmem>>, vector<1x1x1x4x8x128xf32>
      %33 = vector.shape_cast %32 : vector<1x1x1x4x8x128xf32> to vector<4x8x128xf32>
      %34 = vector.shape_cast %19 : vector<4x8x128xf32> to vector<1x1x1x4x8x128xf32>
      tpu.vector_store %arg5[%c0_26, %c0_27, %c2, %c0_28, %c0_29, %c0_30], %34 {strides = array<i32>} : memref<1x1x3x4x8x128xf32, #tpu.memory_space<vmem>>, vector<1x1x1x4x8x128xf32>,
    } else {
    }
    %c0_i32_13 = arith.constant 0 : i32
    %23 = arith.cmpi ne, %arg2, %c0_i32_13 : i32
    %24 = arith.extui %23 : i1 to i32
    %c0_i32_14 = arith.constant 0 : i32
    %25 = arith.cmpi ne, %24, %c0_i32_14 : i32
    scf.if %25 {
      %c0_15 = arith.constant 0 : index
      %c0_16 = arith.constant 0 : index
      %c0_17 = arith.constant 0 : index
      %c0_18 = arith.constant 0 : index
      %c0_19 = arith.constant 0 : index
      %c0_20 = arith.constant 0 : index
      %26 = vector.load %arg5[%c0_15, %c0_16, %c0_17, %c0_18, %c0_19, %c0_20] : memref<1x1x3x4x8x128xf32, #tpu.memory_space<vmem>>, vector<1x1x1x4x8x128xf32>
      %27 = vector.shape_cast %26 : vector<1x1x1x4x8x128xf32> to vector<4x8x128xf32>
      %28 = arith.addf %27, %15 : vector<4x8x128xf32>
      %c0_21 = arith.constant 0 : index
      %c0_22 = arith.constant 0 : index
      %c0_23 = arith.constant 0 : index
      %c0_24 = arith.constant 0 : index
      %c0_25 = arith.constant 0 : index
      %c0_26 = arith.constant 0 : index
      %29 = vector.load %arg5[%c0_21, %c0_22, %c0_23, %c0_24, %c0_25, %c0_26] : memref<1x1x3x4x8x128xf32, #tpu.memory_space<vmem>>, vector<1x1x1x4x8x128xf32>
      %30 = vector.shape_cast %29 : vector<1x1x1x4x8x128xf32> to vector<4x8x128xf32>
      %31 = vector.shape_cast %28 : vector<4x8x128xf32> to vector<1x1x1x4x8x128xf32>
      tpu.vector_store %arg5[%c0_21, %c0_22, %c0_23, %c0_24, %c0_25, %c0_26], %31 {strides = array<i32>} : memref<1x1x3x4x8x128xf32, #tpu.memory_space<vmem>>, vector<1x1x1x4x8x128xf32>,
      %c0_27 = arith.constant 0 : index
      %c0_28 = arith.constant 0 : index
      %c1 = arith.constant 1 : index
      %c0_29 = arith.constant 0 : index
      %c0_30 = arith.constant 0 : index
      %c0_31 = arith.constant 0 : index
      %32 = vector.load %arg5[%c0_27, %c0_28, %c1, %c0_29, %c0_30, %c0_31] : memref<1x1x3x4x8x128xf32, #tpu.memory_space<vmem>>, vector<1x1x1x4x8x128xf32>
      %33 = vector.shape_cast %32 : vector<1x1x1x4x8x128xf32> to vector<4x8x128xf32>
      %34 = arith.addf %33, %17 : vector<4x8x128xf32>
      %c0_32 = arith.constant 0 : index
      %c0_33 = arith.constant 0 : index
      %c1_34 = arith.constant 1 : index
      %c0_35 = arith.constant 0 : index
      %c0_36 = arith.constant 0 : index
      %c0_37 = arith.constant 0 : index
      %35 = vector.load %arg5[%c0_32, %c0_33, %c1_34, %c0_35, %c0_36, %c0_37] : memref<1x1x3x4x8x128xf32, #tpu.memory_space<vmem>>, vector<1x1x1x4x8x128xf32>
      %36 = vector.shape_cast %35 : vector<1x1x1x4x8x128xf32> to vector<4x8x128xf32>
      %37 = vector.shape_cast %34 : vector<4x8x128xf32> to vector<1x1x1x4x8x128xf32>
      tpu.vector_store %arg5[%c0_32, %c0_33, %c1_34, %c0_35, %c0_36, %c0_37], %37 {strides = array<i32>} : memref<1x1x3x4x8x128xf32, #tpu.memory_space<vmem>>, vector<1x1x1x4x8x128xf32>,
      %c0_38 = arith.constant 0 : index
      %c0_39 = arith.constant 0 : index
      %c2 = arith.constant 2 : index
      %c0_40 = arith.constant 0 : index
      %c0_41 = arith.constant 0 : index
      %c0_42 = arith.constant 0 : index
      %38 = vector.load %arg5[%c0_38, %c0_39, %c2, %c0_40, %c0_41, %c0_42] : memref<1x1x3x4x8x128xf32, #tpu.memory_space<vmem>>, vector<1x1x1x4x8x128xf32>
      %39 = vector.shape_cast %38 : vector<1x1x1x4x8x128xf32> to vector<4x8x128xf32>
      %40 = arith.addf %39, %19 : vector<4x8x128xf32>
      %c0_43 = arith.constant 0 : index
      %c0_44 = arith.constant 0 : index
      %c2_45 = arith.constant 2 : index
      %c0_46 = arith.constant 0 : index
      %c0_47 = arith.constant 0 : index
      %c0_48 = arith.constant 0 : index
      %41 = vector.load %arg5[%c0_43, %c0_44, %c2_45, %c0_46, %c0_47, %c0_48] : memref<1x1x3x4x8x128xf32, #tpu.memory_space<vmem>>, vector<1x1x1x4x8x128xf32>
      %42 = vector.shape_cast %41 : vector<1x1x1x4x8x128xf32> to vector<4x8x128xf32>
      %43 = vector.shape_cast %40 : vector<4x8x128xf32> to vector<1x1x1x4x8x128xf32>
      tpu.vector_store %arg5[%c0_43, %c0_44, %c2_45, %c0_46, %c0_47, %c0_48], %43 {strides = array<i32>} : memref<1x1x3x4x8x128xf32, #tpu.memory_space<vmem>>, vector<1x1x1x4x8x128xf32>,
    } else {
    }
    return
  }
  func.func @transform_0(%arg0: i32, %arg1: i32, %arg2: i32) -> (i32, i32, i32, i32) {
    %c1_i32 = arith.constant 1 : i32
    %0 = arith.muli %arg1, %c1_i32 : i32
    %1 = arith.addi %0, %arg2 : i32
    %c0_i32 = arith.constant 0 : i32
    %c0_i32_0 = arith.constant 0 : i32
    %c0_i32_1 = arith.constant 0 : i32
    return %arg0, %c0_i32, %1, %c0_i32_0 : i32, i32, i32, i32
  }
  func.func @transform_1(%arg0: i32, %arg1: i32, %arg2: i32) -> (i32, i32, i32, i32) {
    %c1_i32 = arith.constant 1 : i32
    %0 = arith.muli %arg1, %c1_i32 : i32
    %1 = arith.addi %0, %arg2 : i32
    %c0_i32 = arith.constant 0 : i32
    %c0_i32_0 = arith.constant 0 : i32
    %c0_i32_1 = arith.constant 0 : i32
    return %arg0, %c0_i32, %1, %c0_i32_0 : i32, i32, i32, i32
  }
  func.func @transform_2(%arg0: i32, %arg1: i32, %arg2: i32) -> (i32, i32, i32, i32, i32, i32) {
    %c0_i32 = arith.constant 0 : i32
    %c0_i32_0 = arith.constant 0 : i32
    %c0_i32_1 = arith.constant 0 : i32
    %c0_i32_2 = arith.constant 0 : i32
    %c0_i32_3 = arith.constant 0 : i32
    return %arg0, %arg1, %c0_i32, %c0_i32_0, %c0_i32_1, %c0_i32_2 : i32, i32, i32, i32, i32, i32
  }
}

</mosaic_0001>

<llo_original>
// kernel: tpu_custom_call.1
$region0: #{tpu_custom_call.1}
  #allocation0 [shape = 'u32[]', space=smem, size = 0x4, offset = 0x4, fixed_abs, tag = 'smem constant byte address 0x4 - core index']
  #allocation1 [shape = 'u32[144,128]{1,0:T(1,128)}', space=vmem, size = 0x12000, scoped, tag = 'internal scratch']
  %s0 = inlined_call_operand.hbm [shape: f32[2,4,16,128], index: 0, kind: input, shape index: {}]
  %s1 = inlined_call_operand.hbm [shape: bf16[2,4,16,128], index: 1, kind: input, shape index: {}]
  %s2 = inlined_call_operand.hbm [shape: f32[2,1,3,4,8,128], index: 2, kind: output, shape index: {}]
  %s3 = sld [smem:[#allocation0]]
  $region57: #{tpu_custom_call.1} parent=0
    _
  %s5 = ssub.s32 1, %s3
  %s6 = scalar_select 0, %s5, %s3
  $region1: #{tpu_custom_call.1} parent=0
    #allocation2 [shape = 'u8[65536]{0}', space=vmem, size = 0x10000, scoped, tag = 'input window, operand 0']
    #allocation3 [shape = 's32[2]{0}', space=sflag, size = 0x8, scoped, tag = 'scoped memory for tpu_custom_call.1']
    #allocation4 [shape = 's32[2]{0}', space=sflag, size = 0x8, scoped, tag = 'scoped memory for tpu_custom_call.1']
    #allocation5 [shape = 'u8[32768]{0}', space=vmem, size = 0x8000, scoped, tag = 'input window, operand 1']
    #allocation6 [shape = 's32[2]{0}', space=sflag, size = 0x8, scoped, tag = 'scoped memory for tpu_custom_call.1']
    #allocation7 [shape = 'u8[98304]{0}', space=vmem, size = 0x18000, scoped, tag = 'output window, operand 0']
    %7 = vsyncpa [#allocation3], 0
    %s8 = scalar_lea.sflag [#allocation3], 1
    %9 = vsyncpa %s8, 0
    %10 = vsyncpa [#allocation6], 0
    %s11 = scalar_lea.sflag [#allocation6], 1
    %12 = vsyncpa %s11, 0
    %13 = vsyncpa [#allocation4], 0
    %s14 = scalar_lea.sflag [#allocation4], 1
    %15 = vsyncpa %s14, 0
    loop: start=0, step=1, limit=4
    $region2: #{tpu_custom_call.1} parent=1 // loop_pre_header
      _
    $region3: #{tpu_custom_call.1} parent=1 // loop_header
      %s17 = sphi 0, %s21
      %p18 = scmp.ge.s32.totalorder %s17, 4
      %s24 = sphi 0, %s43
      %s25 = sphi 0, %s39
      %s26 = sphi 0, %s35
      %s27 = sphi 0, %s24
      %s28 = sphi 0, %s25
      %s29 = sphi 0, %s26
      %s30 = sphi 0, %s27
      %s31 = sphi 0, %s28
      %s32 = sphi 0, %s29
      %s50 = sphi 0, %s52
      %s53 = sphi 0, %s50
      %s54 = sphi 0, %s53
      %s70 = sphi 0, %s54
      %s80 = sphi 0, %s82
      %s83 = sphi 0, %s80
      %s84 = sphi 0, %s83
      %s100 = sphi 0, %s84
      %s108 = sphi 0, %s110
      %s111 = sphi 0, %s108
      %s112 = sphi 0, %s111
      %s128 = sphi 0, %s112
    $region4: #{tpu_custom_call.1} parent=1 // loop_header_branch
      %20 = sbr.rel (%p18) target = $region8
    $region5: #{tpu_custom_call.1} parent=1 // loop_body
      %s22 = ssub.s32 %s17, 1
      %s23 = ssub.s32 %s17, 2
      %s33 = sadd.s32 1, %s26
      %p34 = scmp.ge.s32.totalorder %s33, 1
      %s35 = scalar_select %p34, 0, %s33
      %s36 = sadd.s32 1, %s25
      %s37 = scalar_select %p34, %s36, %s25
      %p38 = scmp.ge.s32.totalorder %s37, 1
      %s39 = scalar_select %p38, 0, %s37
      %s40 = sadd.s32 1, %s24
      %s41 = scalar_select %p38, %s40, %s24
      %p42 = scmp.ge.s32.totalorder %s41, 2
      %s43 = scalar_select %p42, 0, %s41
      %s44 = sadd.s32 %s25, %s26
      %s45 = sadd.s32 %s39, %s35
      %s46 = ssub.s32 %s24, %s43
      %s47 = ssub.s32 %s44, %s45
      %s48 = sor.u32 %s46, %s47
      %p49 = scmp.eq.s32.totalorder %s48, 0
      %s51 = sadd.s32 %s50, 1
      %s52 = scalar_select %p49, %s50, %s51
      %p55 = pneg %p49
      %p56 = scmp.eq.s32.totalorder %s17, 1
      %p57 = por %p55, %p56
      %p58 = scmp.ne.s32.totalorder %s50, %s53
      %p59 = scmp.eq.s32.totalorder %s17, 0
      %p60 = por %p58, %p59
      %p61 = scmp.ne.s32.totalorder %s50, %s53
      %p62 = scmp.eq.s32.totalorder %s22, 1
      %p63 = por %p61, %p62
      %p64 = scmp.ne.s32.totalorder %s53, %s54
      %p65 = scmp.eq.s32.totalorder %s22, 0
      %p66 = por %p64, %p65
      %p67 = scmp.ne.s32.totalorder %s53, %s54
      %p68 = scmp.eq.s32.totalorder %s23, 1
      %p69 = por %p67, %p68
      %p71 = scmp.ne.s32.totalorder %s54, %s70
      %p72 = scmp.eq.s32.totalorder %s23, 0
      %p73 = por %p71, %p72
      %s74 = sadd.s32 %s25, %s26
      %s75 = sadd.s32 %s39, %s35
      %s76 = ssub.s32 %s24, %s43
      %s77 = ssub.s32 %s74, %s75
      %s78 = sor.u32 %s76, %s77
      %p79 = scmp.eq.s32.totalorder %s78, 0
      %s81 = sadd.s32 %s80, 1
      %s82 = scalar_select %p79, %s80, %s81
      %p85 = pneg %p79
      %p86 = scmp.eq.s32.totalorder %s17, 1
      %p87 = por %p85, %p86
      %p88 = scmp.ne.s32.totalorder %s80, %s83
      %p89 = scmp.eq.s32.totalorder %s17, 0
      %p90 = por %p88, %p89
      %p91 = scmp.ne.s32.totalorder %s80, %s83
      %p92 = scmp.eq.s32.totalorder %s22, 1
      %p93 = por %p91, %p92
      %p94 = scmp.ne.s32.totalorder %s83, %s84
      %p95 = scmp.eq.s32.totalorder %s22, 0
      %p96 = por %p94, %p95
      %p97 = scmp.ne.s32.totalorder %s83, %s84
      %p98 = scmp.eq.s32.totalorder %s23, 1
      %p99 = por %p97, %p98
      %p101 = scmp.ne.s32.totalorder %s84, %s100
      %p102 = scmp.eq.s32.totalorder %s23, 0
      %p103 = por %p101, %p102
      %s104 = ssub.s32 %s24, %s43
      %s105 = ssub.s32 %s25, %s39
      %s106 = sor.u32 %s104, %s105
      %p107 = scmp.eq.s32.totalorder %s106, 0
      %s109 = sadd.s32 %s108, 1
      %s110 = scalar_select %p107, %s108, %s109
      %p113 = pneg %p107
      %p114 = scmp.eq.s32.totalorder %s17, 1
      %p115 = por %p113, %p114
      %p116 = scmp.ne.s32.totalorder %s108, %s111
      %p117 = scmp.eq.s32.totalorder %s17, 0
      %p118 = por %p116, %p117
      %p119 = scmp.ne.s32.totalorder %s108, %s111
      %p120 = scmp.eq.s32.totalorder %s22, 1
      %p121 = por %p119, %p120
      %p122 = scmp.ne.s32.totalorder %s111, %s112
      %p123 = scmp.eq.s32.totalorder %s22, 0
      %p124 = por %p122, %p123
      %p125 = scmp.ne.s32.totalorder %s111, %s112
      %p126 = scmp.eq.s32.totalorder %s23, 1
      %p127 = por %p125, %p126
      %p129 = scmp.ne.s32.totalorder %s112, %s128
      %p130 = scmp.eq.s32.totalorder %s23, 0
      %p131 = por %p129, %p130
      %p132 = scmp.le.s32.totalorder 1, %s17
      %p133 = scmp.lt.s32.totalorder %s17, 3
      %p134 = pnand %p132, %p133
      %p135 = pneg %p134
      // Predicated region
      $region9: #{tpu_custom_call.1} parent=5 // pred_check
        _
      $region10: #{tpu_custom_call.1} parent=5 // pred_check_branch
        %137 = sbr.rel (%p134) target = $region12
      $region11: #{tpu_custom_call.1} parent=5 // pred_region
        %s138 = ssub.s32 %s17, 1
      $region12: #{tpu_custom_call.1} parent=5 // pred_fallthru
        _
      %p139 = scmp.lt.s32.totalorder %s17, 2
      // Predicated region
      $region13: #{tpu_custom_call.1} parent=5 // pred_check
        %p140 = pneg %p139
      $region14: #{tpu_custom_call.1} parent=5 // pred_check_branch
        %142 = sbr.rel (%p140) target = $region16
      $region15: #{tpu_custom_call.1} parent=5 // pred_region
        // Predicated region
        $region17: #{tpu_custom_call.1} parent=15 // pred_check
          %p143 = pneg %p60
        $region18: #{tpu_custom_call.1} parent=15 // pred_check_branch
          %145 = sbr.rel (%p143) target = $region20
        $region19: #{tpu_custom_call.1} parent=15 // pred_region
          %s146 = sand.u32 %s50, 1
          %s147 = scalar_lea.sflag [#allocation3], %s146
          %s148 = sand.u32 %s50, 1
          %s149 = smul.addr %s148, 64
          %s150 = scalar_lea.vmem [#allocation2], %s149
          %s151 = sadd.s32 %s25, %s26
          %s152 = smul.u32 2, %s151
          %s154 = ssub.s32 1024, 1024
          %155 = vsyncadd %s147, %s154
          %s156 = smul.addr %s24, 8
          %s157 = sadd.s32 %s152, %s156
          %s158 = smul.addr %s157, 128
          %s159 = scalar_lea.hbm %s0, %s158
          %s160 = sshll.u32 %s150, 4
          %s161 = int_to_ptr.vmem [resolvable:$true] %s160
          %166 = dma.hbm_to_vmem [thread:$0]  %s159, 1024, %s161, %s147, 128, 128, 8
        $region20: #{tpu_custom_call.1} parent=15 // pred_fallthru
          _
        // Predicated region
        $region21: #{tpu_custom_call.1} parent=15 // pred_check
          %p167 = pneg %p90
        $region22: #{tpu_custom_call.1} parent=15 // pred_check_branch
          %169 = sbr.rel (%p167) target = $region24
        $region23: #{tpu_custom_call.1} parent=15 // pred_region
          %s170 = sand.u32 %s80, 1
          %s171 = scalar_lea.sflag [#allocation6], %s170
          %s172 = sand.u32 %s80, 1
          %s173 = smul.addr %s172, 32
          %s174 = scalar_lea.vmem [#allocation5], %s173
          %s175 = sadd.s32 %s25, %s26
          %s176 = smul.u32 2, %s175
          %s178 = ssub.s32 512, 512
          %179 = vsyncadd %s171, %s178
          %s180 = smul.addr %s24, 8
          %s181 = sadd.s32 %s176, %s180
          %s182 = smul.addr %s181, 64
          %s183 = scalar_lea.hbm %s1, %s182
          %s184 = sshll.u32 %s174, 4
          %s185 = int_to_ptr.vmem [resolvable:$true] %s184
          %190 = dma.hbm_to_vmem [thread:$0]  %s183, 512, %s185, %s171, 64, 64, 4
        $region24: #{tpu_custom_call.1} parent=15 // pred_fallthru
          _
      $region16: #{tpu_custom_call.1} parent=5 // pred_fallthru
        _
      %p191 = scmp.le.s32.totalorder 1, %s17
      %p192 = scmp.lt.s32.totalorder %s17, 3
      %p193 = pnand %p191, %p192
      %p194 = pneg %p193
      // Predicated region
      $region25: #{tpu_custom_call.1} parent=5 // pred_check
        _
      $region26: #{tpu_custom_call.1} parent=5 // pred_check_branch
        %196 = sbr.rel (%p193) target = $region28
      $region27: #{tpu_custom_call.1} parent=5 // pred_region
        %s197 = ssub.s32 %s17, 1
        %s198 = sand.u32 %s53, 1
        %s199 = scalar_lea.sflag [#allocation3], %s198
        %s200 = sand.u32 %s53, 1
        %s201 = smul.addr %s200, 64
        %s202 = scalar_lea.vmem [#allocation2], %s201
        // Predicated region
        $region29: #{tpu_custom_call.1} parent=27 // pred_check
          %p203 = pneg %p66
        $region30: #{tpu_custom_call.1} parent=27 // pred_check_branch
          %205 = sbr.rel (%p203) target = $region32
        $region31: #{tpu_custom_call.1} parent=27 // pred_region
          %206 = dma.done %s199, 1024
        $region32: #{tpu_custom_call.1} parent=27 // pred_fallthru
          _
        %s207 = sand.u32 %s83, 1
        %s208 = scalar_lea.sflag [#allocation6], %s207
        %s209 = sand.u32 %s83, 1
        %s210 = smul.addr %s209, 32
        %s211 = scalar_lea.vmem [#allocation5], %s210
        // Predicated region
        $region33: #{tpu_custom_call.1} parent=27 // pred_check
          %p212 = pneg %p96
        $region34: #{tpu_custom_call.1} parent=27 // pred_check_branch
          %214 = sbr.rel (%p212) target = $region36
        $region35: #{tpu_custom_call.1} parent=27 // pred_region
          %215 = dma.done %s208, 512
        $region36: #{tpu_custom_call.1} parent=27 // pred_fallthru
          _
        %s216 = sand.u32 %s53, 1
        %s217 = scalar_lea.sflag [#allocation3], %s216
        %s218 = sand.u32 %s53, 1
        %s219 = smul.addr %s218, 64
        %s220 = scalar_lea.vmem [#allocation2], %s219
        %p221 = pneg %p66
        %p222 = pneg %p63
        %s223 = sand.u32 %s83, 1
        %s224 = scalar_lea.sflag [#allocation6], %s223
        %s225 = sand.u32 %s83, 1
        %s226 = smul.addr %s225, 32
        %s227 = scalar_lea.vmem [#allocation5], %s226
        %p228 = pneg %p96
        %p229 = pneg %p93
        %p230 = pneg %p124
        %p231 = pneg %p121
        %s232 = sand.u32 %s111, 1
        %s233 = scalar_lea.sflag [#allocation4], %s232
        %s234 = sand.u32 %s111, 1
        %s235 = smul.addr %s234, 96
        %s236 = scalar_lea.vmem [#allocation7], %s235
        %s237 = sadd.s32 %s28, %s29
        %s238 = smul.u32 2, %s237
        %s239 = sadd.s32 %s28, %s29
        %s240 = smul.u32 2, %s239
        %v241 = vld [vmem:[%s202] sm:$0xff]
        %v242 = vld [vmem:[%s202 + $0x8] sm:$0xff]
        %v243 = vld [vmem:[%s202 + $0x10] sm:$0xff]
        %v244 = vld [vmem:[%s202 + $0x18] sm:$0xff]
        %v245 = vld [vmem:[%s202 + $0x20] sm:$0xff]
        %v246 = vld [vmem:[%s202 + $0x28] sm:$0xff]
        %v247 = vld [vmem:[%s202 + $0x30] sm:$0xff]
        %v248 = vld [vmem:[%s202 + $0x38] sm:$0xff]
        %v249 = vld [vmem:[%s211] sm:$0xf]
        %v250 = vld [vmem:[%s211 + $0x4] sm:$0xf]
        %v251 = vld [vmem:[%s211 + $0x8] sm:$0xf]
        %v252 = vld [vmem:[%s211 + $0xc] sm:$0xf]
        %v253 = vld [vmem:[%s211 + $0x10] sm:$0xf]
        %v254 = vld [vmem:[%s211 + $0x14] sm:$0xf]
        %v255 = vld [vmem:[%s211 + $0x18] sm:$0xf]
        %v256 = vld [vmem:[%s211 + $0x1c] sm:$0xf]
        %v257 = vunpack.c.l.bf16 %v249
        %v258 = vunpack.c.l.bf16 %v250
        %v259 = vunpack.c.l.bf16 %v251
        %v260 = vunpack.c.l.bf16 %v252
        %v261 = vunpack.c.l.bf16 %v253
        %v262 = vunpack.c.l.bf16 %v254
        %v263 = vunpack.c.l.bf16 %v255
        %v264 = vunpack.c.l.bf16 %v256
        %v265 = vmul.f32 %v241, 0.5
        %v266 = vmul.f32 %v242, 0.5
        %v267 = vmul.f32 %v243, 0.5
        %v268 = vmul.f32 %v244, 0.5
        %v269 = vmul.f32 %v245, 0.5
        %v270 = vmul.f32 %v246, 0.5
        %v271 = vmul.f32 %v247, 0.5
        %v272 = vmul.f32 %v248, 0.5
        %v273 = vtanh.pop %v265
        %v274 = vtanh.pop %v266
        %v275 = vtanh.pop %v267
        %v276 = vtanh.pop %v268
        %v277 = vtanh.pop %v269
        %v278 = vtanh.pop %v270
        %v279 = vtanh.pop %v271
        %v280 = vtanh.pop %v272
        %v281 = vadd.f32 %v273, 1.0
        %v282 = vadd.f32 %v274, 1.0
        %v283 = vadd.f32 %v275, 1.0
        %v284 = vadd.f32 %v276, 1.0
        %v285 = vadd.f32 %v277, 1.0
        %v286 = vadd.f32 %v278, 1.0
        %v287 = vadd.f32 %v279, 1.0
        %v288 = vadd.f32 %v280, 1.0
        %v289 = vmul.f32 %v281, 0.5
        %v290 = vmul.f32 %v282, 0.5
        %v291 = vmul.f32 %v283, 0.5
        %v292 = vmul.f32 %v284, 0.5
        %v293 = vmul.f32 %v285, 0.5
        %v294 = vmul.f32 %v286, 0.5
        %v295 = vmul.f32 %v287, 0.5
        %v296 = vmul.f32 %v288, 0.5
        %v297 = vmul.f32 %v289, %v257
        %v298 = vmul.f32 %v290, %v258
        %v299 = vmul.f32 %v291, %v259
        %v300 = vmul.f32 %v292, %v260
        %v301 = vmul.f32 %v293, %v261
        %v302 = vmul.f32 %v294, %v262
        %v303 = vmul.f32 %v295, %v263
        %v304 = vmul.f32 %v296, %v264
        %v305 = vadd.f32 %v297, %v298
        %v306 = vadd.f32 %v299, %v300
        %v307 = vadd.f32 %v301, %v302
        %v308 = vadd.f32 %v303, %v304
        %v309 = vmul.f32 %v289, %v289
        %v310 = vmul.f32 %v290, %v290
        %v311 = vmul.f32 %v291, %v291
        %v312 = vmul.f32 %v292, %v292
        %v313 = vmul.f32 %v293, %v293
        %v314 = vmul.f32 %v294, %v294
        %v315 = vmul.f32 %v295, %v295
        %v316 = vmul.f32 %v296, %v296
        %v317 = vadd.f32 %v309, %v310
        %v318 = vadd.f32 %v311, %v312
        %v319 = vadd.f32 %v313, %v314
        %v320 = vadd.f32 %v315, %v316
        %v321 = vmul.f32 %v257, %v257
        %v322 = vmul.f32 %v258, %v258
        %v323 = vmul.f32 %v259, %v259
        %v324 = vmul.f32 %v260, %v260
        %v325 = vmul.f32 %v261, %v261
        %v326 = vmul.f32 %v262, %v262
        %v327 = vmul.f32 %v263, %v263
        %v328 = vmul.f32 %v264, %v264
        %v329 = vadd.f32 %v321, %v322
        %v330 = vadd.f32 %v323, %v324
        %v331 = vadd.f32 %v325, %v326
        %v332 = vadd.f32 %v327, %v328
        %p333 = scmp.eq.s32.totalorder %s29, 0
        // Predicated region
        $region37: #{tpu_custom_call.1} parent=27 // pred_check
          %p334 = pneg %p333
        $region38: #{tpu_custom_call.1} parent=27 // pred_check_branch
          %336 = sbr.rel (%p334) target = $region40
        $region39: #{tpu_custom_call.1} parent=27 // pred_region
          %337 = vst [vmem:[%s236] sm:$0xff] %v305
          %338 = vst [vmem:[%s236 + $0x8] sm:$0xff] %v306
          %339 = vst [vmem:[%s236 + $0x10] sm:$0xff] %v307
          %340 = vst [vmem:[%s236 + $0x18] sm:$0xff] %v308
          %s341 = scalar_lea.vmem %s236, 32 [#allocation7]
          %342 = vst [vmem:[%s341] sm:$0xff] %v317
          %343 = vst [vmem:[%s341 + $0x8] sm:$0xff] %v318
          %344 = vst [vmem:[%s341 + $0x10] sm:$0xff] %v319
          %345 = vst [vmem:[%s341 + $0x18] sm:$0xff] %v320
          %s346 = scalar_lea.vmem %s236, 64 [#allocation7]
          %347 = vst [vmem:[%s346] sm:$0xff] %v329
          %348 = vst [vmem:[%s346 + $0x8] sm:$0xff] %v330
          %349 = vst [vmem:[%s346 + $0x10] sm:$0xff] %v331
          %350 = vst [vmem:[%s346 + $0x18] sm:$0xff] %v332
        $region40: #{tpu_custom_call.1} parent=27 // pred_fallthru
          _
        %p351 = scmp.ne.s32.totalorder %s29, 0
        // Predicated region
        $region41: #{tpu_custom_call.1} parent=27 // pred_check
          %p352 = pneg %p351
        $region42: #{tpu_custom_call.1} parent=27 // pred_check_branch
          %354 = sbr.rel (%p352) target = $region44
        $region43: #{tpu_custom_call.1} parent=27 // pred_region
          %v355 = vld [vmem:[%s236] sm:$0xff]
          %v356 = vld [vmem:[%s236 + $0x8] sm:$0xff]
          %v357 = vld [vmem:[%s236 + $0x10] sm:$0xff]
          %v358 = vld [vmem:[%s236 + $0x18] sm:$0xff]
          %v359 = vadd.f32 %v355, %v305
          %v360 = vadd.f32 %v356, %v306
          %v361 = vadd.f32 %v357, %v307
          %v362 = vadd.f32 %v358, %v308
          %363 = vst [vmem:[%s236] sm:$0xff] %v359
          %364 = vst [vmem:[%s236 + $0x8] sm:$0xff] %v360
          %365 = vst [vmem:[%s236 + $0x10] sm:$0xff] %v361
          %366 = vst [vmem:[%s236 + $0x18] sm:$0xff] %v362
          %s367 = scalar_lea.vmem %s236, 32 [#allocation7]
          %v368 = vld [vmem:[%s367] sm:$0xff]
          %v369 = vld [vmem:[%s367 + $0x8] sm:$0xff]
          %v370 = vld [vmem:[%s367 + $0x10] sm:$0xff]
          %v371 = vld [vmem:[%s367 + $0x18] sm:$0xff]
          %v372 = vadd.f32 %v368, %v317
          %v373 = vadd.f32 %v369, %v318
          %v374 = vadd.f32 %v370, %v319
          %v375 = vadd.f32 %v371, %v320
          %376 = vst [vmem:[%s367] sm:$0xff] %v372
          %377 = vst [vmem:[%s367 + $0x8] sm:$0xff] %v373
          %378 = vst [vmem:[%s367 + $0x10] sm:$0xff] %v374
          %379 = vst [vmem:[%s367 + $0x18] sm:$0xff] %v375
          %s380 = scalar_lea.vmem %s236, 64 [#allocation7]
          %v381 = vld [vmem:[%s380] sm:$0xff]
          %v382 = vld [vmem:[%s380 + $0x8] sm:$0xff]
          %v383 = vld [vmem:[%s380 + $0x10] sm:$0xff]
          %v384 = vld [vmem:[%s380 + $0x18] sm:$0xff]
          %v385 = vadd.f32 %v381, %v329
          %v386 = vadd.f32 %v382, %v330
          %v387 = vadd.f32 %v383, %v331
          %v388 = vadd.f32 %v384, %v332
          %389 = vst [vmem:[%s380] sm:$0xff] %v385
          %390 = vst [vmem:[%s380 + $0x8] sm:$0xff] %v386
          %391 = vst [vmem:[%s380 + $0x10] sm:$0xff] %v387
          %392 = vst [vmem:[%s380 + $0x18] sm:$0xff] %v388
        $region44: #{tpu_custom_call.1} parent=27 // pred_fallthru
          _
        %s393 = sand.u32 %s111, 1
        %s394 = scalar_lea.sflag [#allocation4], %s393
        %s395 = sand.u32 %s111, 1
        %s396 = smul.addr %s395, 96
        %s397 = scalar_lea.vmem [#allocation7], %s396
        // Predicated region
        $region45: #{tpu_custom_call.1} parent=27 // pred_check
          %p398 = pneg %p121
        $region46: #{tpu_custom_call.1} parent=27 // pred_check_branch
          %400 = sbr.rel (%p398) target = $region48
        $region47: #{tpu_custom_call.1} parent=27 // pred_region
          %s402 = ssub.s32 1536, 1536
          %403 = vsyncadd %s394, %s402
          %s404 = smul.addr %s28, 12
          %s405 = smul.addr %s27, 12
          %s406 = sadd.s32 %s404, %s405
          %s407 = smul.addr %s406, 128
          %s408 = scalar_lea.hbm %s2, %s407
          %s409 = sshll.u32 %s397, 4
          %s410 = int_to_ptr.vmem [resolvable:$true] %s409
          %415 = dma.vmem_to_hbm [thread:$0]  %s410, 1536, %s408, %s394, 128, 128, 8
        $region48: #{tpu_custom_call.1} parent=27 // pred_fallthru
          _
      $region28: #{tpu_custom_call.1} parent=5 // pred_fallthru
        _
      %p416 = scmp.le.s32.totalorder 2, %s17
      // Predicated region
      $region49: #{tpu_custom_call.1} parent=5 // pred_check
        %p417 = pneg %p416
      $region50: #{tpu_custom_call.1} parent=5 // pred_check_branch
        %419 = sbr.rel (%p417) target = $region52
      $region51: #{tpu_custom_call.1} parent=5 // pred_region
        %s420 = ssub.s32 %s17, 2
        // Predicated region
        $region53: #{tpu_custom_call.1} parent=51 // pred_check
          %p421 = pneg %p127
        $region54: #{tpu_custom_call.1} parent=51 // pred_check_branch
          %423 = sbr.rel (%p421) target = $region56
        $region55: #{tpu_custom_call.1} parent=51 // pred_region
          %s424 = sand.u32 %s112, 1
          %s425 = scalar_lea.sflag [#allocation4], %s424
          %s426 = sand.u32 %s112, 1
          %s427 = smul.addr %s426, 96
          %s428 = scalar_lea.vmem [#allocation7], %s427
          %429 = dma.done %s425, 1536
        $region56: #{tpu_custom_call.1} parent=51 // pred_fallthru
          _
      $region52: #{tpu_custom_call.1} parent=5 // pred_fallthru
        _
    $region6: #{tpu_custom_call.1} parent=1 // loop_footer
      %s21 = sadd.s32 1, %s17
    $region7: #{tpu_custom_call.1} parent=1 // loop_footer_branch
      %16 = sbr.rel target = $region3
    $region8: #{tpu_custom_call.1} parent=1 // loop_exit
      _
    %430 = vsyncpa [#allocation3], 1
    %s431 = scalar_lea.sflag [#allocation3], 1
    %432 = vsyncpa %s431, 1
    %433 = vsyncpa [#allocation6], 1
    %s434 = scalar_lea.sflag [#allocation6], 1
    %435 = vsyncpa %s434, 1
    %436 = vsyncpa [#allocation4], 1
    %s437 = scalar_lea.sflag [#allocation4], 1
    %438 = vsyncpa %s437, 1

</llo_original>
